<compile_context>
chip_gen: v6e
topology: v6e:2x2x1
jax: 0.10.0
libtpu: 0.0.40
codegen_flags: <defaults>
</compile_context>

<pallas_src>
import functools
import math

import jax
import jax.numpy as jnp
from jax import lax
from jax.experimental import pallas as pl
from jax.experimental.pallas import tpu as pltpu

# ---- MagFace hyper-parameters (module defaults) ----
S = 64.0
L_MARGIN = 0.45
U_MARGIN = 0.8
L_A = 10.0
U_A = 110.0
LAMBDA_G = 35.0
EASY_MARGIN = True  # MagLinear default


def _magface_kernel(xn_ref, wn_ref, stats_ref, tgt_ref, out_ref, *, tn, scale):
    """One [TM, TN] output tile: cos_theta + adaptive-margin + one-hot mix."""
    j = pl.program_id(0)                                    # class-tile index

    # cos_theta = normalize(x) @ normalize(W)  (both pre-normalized, bf16)
    cos_theta = jnp.dot(xn_ref[...], wn_ref[...],
                        preferred_element_type=jnp.float32)  # [TM, TN] f32
    cos_theta = jnp.clip(cos_theta, -1.0, 1.0)

    # per-row precomputed stats: [cos_m, sin_m, threshold, mm]
    cos_m = stats_ref[:, 0:1]                                # [TM, 1]
    sin_m = stats_ref[:, 1:2]
    thr = stats_ref[:, 2:3]
    mm = stats_ref[:, 3:4]

    sin_theta = jnp.sqrt(jnp.maximum(1.0 - cos_theta * cos_theta, 0.0))
    cos_theta_m = cos_theta * cos_m - sin_theta * sin_m
    # easy_margin: thr = 0, mm = 0  ->  where(cos > 0, cos_theta_m, cos_theta)
    # hard margin: thr = cos(pi-m), mm = sin(pi-m)*m
    cos_theta_m = jnp.where(cos_theta > thr, cos_theta_m, cos_theta - mm)

    # one-hot mixing as a single select (iota offset by the class tile)
    col_ids = lax.broadcasted_iota(jnp.int32, cos_theta.shape, 1) + j * tn
    output = jnp.where(col_ids == tgt_ref[...], cos_theta_m, cos_theta)

    if scale != 1.0:          # optional fused s*logits
        output = output * scale
    out_ref[...] = output.astype(out_ref.dtype)


def magface_forward(x, weight, target, *, s=S, l_margin=L_MARGIN,
                    u_margin=U_MARGIN, l_a=L_A, u_a=U_A, lambda_g=LAMBDA_G,
                    easy_margin=EASY_MARGIN, tm=128, tn=2048,
                    fuse_scale=False):
    """Returns (output, s, lambda_g * loss_g), matching MagFace.forward."""
    B, D = x.shape
    D2, C = weight.shape
    assert D == D2, "weight must be [in_feature, out_feature]"

    tm = min(tm, B)
    tn = min(tn, C)
    assert B % tm == 0 and (tm % 8 == 0 or tm == B), "bad batch tile"
    assert C % tn == 0 and (tn % 128 == 0 or tn == C), "bad class tile"

    x32 = x.astype(jnp.float32)
    w32 = weight.astype(jnp.float32)

    # ---- per-row stats (tiny BxD work; fuses with the bf16 casts) ----
    xn_raw = jnp.sqrt(jnp.sum(x32 * x32, axis=1, keepdims=True))     # [B, 1]
    xn = jnp.clip(xn_raw, l_a, u_a)
    ada = (u_margin - l_margin) / (u_a - l_a) * (xn - l_a) + l_margin
    cos_m = jnp.cos(ada)
    sin_m = jnp.sin(ada)
    if easy_margin:
        thr = jnp.zeros_like(ada)
        mm = jnp.zeros_like(ada)
    else:
        thr = jnp.cos(math.pi - ada)
        mm = jnp.sin(math.pi - ada) * ada
    stats = jnp.concatenate([cos_m, sin_m, thr, mm], axis=1)         # [B, 4]

    # ---- pre-normalize operands once (fp32 math, bf16 MXU streams) ----
    x_n16 = (x32 / jnp.maximum(xn_raw, 1e-12)).astype(jnp.bfloat16)   # [B, D]
    inv_wn = lax.rsqrt(jnp.maximum(jnp.sum(w32 * w32, axis=0,
                                           keepdims=True), 1e-24))    # [1, C]
    w_n16 = (w32 * inv_wn).astype(jnp.bfloat16)                       # [D, C]

    tgt2d = target.astype(jnp.int32).reshape(B, 1)

    # Class tiles on the OUTER grid axis, batch tiles inner: the big weight
    # tile is fetched once per class tile and stays resident across batches.
    grid = (C // tn, B // tm)
    kernel = functools.partial(_magface_kernel, tn=tn,
                               scale=(float(s) if fuse_scale else 1.0))

    out = pl.pallas_call(
        kernel,
        out_shape=jax.ShapeDtypeStruct((B, C), jnp.float32),
        grid_spec=pltpu.PrefetchScalarGridSpec(
            num_scalar_prefetch=0,
            grid=grid,
            in_specs=[
                pl.BlockSpec((tm, D), lambda j, i: (i, 0)),   # normalized x
                pl.BlockSpec((D, tn), lambda j, i: (0, j)),   # normalized W
                pl.BlockSpec((tm, 4), lambda j, i: (i, 0)),   # per-row stats
                pl.BlockSpec((tm, 1), lambda j, i: (i, 0)),   # target ids
            ],
            out_specs=pl.BlockSpec((tm, tn), lambda j, i: (i, j)),
        ),
        compiler_params=pltpu.CompilerParams(
            dimension_semantics=("parallel", "parallel"),     # megacore-shardable
            vmem_limit_bytes=48 * 1024 * 1024),
    )(x_n16, w_n16, stats, tgt2d)

    # loss_g only needs the clamped ||x|| per row (matches MagLoss.calc_loss_G)
    loss_g = jnp.mean(xn / (u_a * u_a) + 1.0 / xn)

    return out, s, lambda_g * loss_g


def init_weight(key, in_features, out_features):
    # PyTorch: uniform_(-1, 1).renorm_(2, 1, 1e-5).mul_(1e5)
    #  -> each column renormalized to L2 norm 1.
    w = jax.random.uniform(key, (in_features, out_features),
                           minval=-1.0, maxval=1.0, dtype=jnp.float32)
    col_norm = jnp.sqrt(jnp.sum(w * w, axis=0, keepdims=True))
    w = w / col_norm * jnp.minimum(col_norm, 1e-5) * 1e5
    return w


def _magface_ref(x, w, target, *, easy_margin=True):
    """Pure-JAX fp32 reference of the PyTorch forward (for sanity checking)."""
    x = x.astype(jnp.float32)
    w = w.astype(jnp.float32)
    xn_raw = jnp.sqrt(jnp.sum(x * x, axis=1, keepdims=True))
    xn = jnp.clip(xn_raw, L_A, U_A)
    m = (U_MARGIN - L_MARGIN) / (U_A - L_A) * (xn - L_A) + L_MARGIN
    cos_m, sin_m = jnp.cos(m), jnp.sin(m)
    x_n = x / jnp.maximum(xn_raw, 1e-12)
    w_n = w / jnp.maximum(jnp.sqrt(jnp.sum(w * w, axis=0, keepdims=True)), 1e-12)
    c = jnp.clip(x_n @ w_n, -1.0, 1.0)
    st = jnp.sqrt(jnp.maximum(1.0 - c * c, 0.0))
    cm = c * cos_m - st * sin_m
    if easy_margin:
        cm = jnp.where(c > 0, cm, c)
    else:
        mm = jnp.sin(math.pi - m) * m
        thr = jnp.cos(math.pi - m)
        cm = jnp.where(c > thr, cm, c - mm)
    one_hot = jax.nn.one_hot(target, w.shape[1], dtype=jnp.float32)
    out = one_hot * cm + (1.0 - one_hot) * c
    loss_g = jnp.mean(xn / (U_A * U_A) + 1.0 / xn)
    return out, LAMBDA_G * loss_g


if __name__ == "__main__":
    B, IN_FEATURE, OUT_FEATURE = 8, 128, 512

    key = jax.random.PRNGKey(0)
    kx, kw, kt = jax.random.split(key, 3)

    x = jax.random.normal(kx, (B, IN_FEATURE), dtype=jnp.float32)
    weight = init_weight(kw, IN_FEATURE, OUT_FEATURE)
    target = jax.random.randint(kt, (B,), 0, OUT_FEATURE, dtype=jnp.int32)

    # tn=256 exercises a 2-wide class-tile grid at this small demo size.
    output, s, g_loss = magface_forward(x, weight, target, tn=256)
    jax.block_until_ready(output)
    jax.block_until_ready(g_loss)

    assert output.shape == (B, OUT_FEATURE)
    assert bool(jnp.isfinite(output).all())
    assert bool(jnp.isfinite(g_loss))

    # correctness vs pure-JAX reference (loose tol: bf16 matmul inside kernel)
    ref_out, ref_g = _magface_ref(x, weight, target, easy_margin=True)
    assert bool(jnp.max(jnp.abs(output - ref_out)) < 1e-2)
    assert bool(jnp.abs(g_loss - ref_g) < 1e-3)

    # also exercise the hard-margin (easy_margin=False) path
    out_h, _, _ = magface_forward(x, weight, target, tn=256, easy_margin=False)
    ref_h, _ = _magface_ref(x, weight, target, easy_margin=False)
    jax.block_until_ready(out_h)
    assert bool(jnp.max(jnp.abs(out_h - ref_h)) < 1e-2)

    print("KERNEL_OK")
</pallas_src>

<mosaic_0001>
module attributes {stable_mosaic.version = 11 : i64} {
  func.func @_magface_kernel(%arg0: i32, %arg1: i32, %arg2: memref<8x128xbf16, #tpu.memory_space<vmem>>, %arg3: memref<128x256xbf16, #tpu.memory_space<vmem>>, %arg4: memref<8x4xf32, #tpu.memory_space<vmem>>, %arg5: memref<8x1xi32, #tpu.memory_space<vmem>>, %arg6: memref<8x256xf32, #tpu.memory_space<vmem>>) attributes {dimension_semantics = [#tpu.dimension_semantics<parallel>, #tpu.dimension_semantics<parallel>], iteration_bounds = array<i64: 2, 1>, scalar_prefetch = 0 : i64, scratch_operands = 0 : i64, tpu.core_type = #tpu.core_type<tc>, window_params = [{transform_indices = @transform_0, window_bounds = array<i64: 8, 128>}, {transform_indices = @transform_1, window_bounds = array<i64: 128, 256>}, {transform_indices = @transform_2, window_bounds = array<i64: 8, 4>}, {transform_indices = @transform_3, window_bounds = array<i64: 8, 1>}, {transform_indices = @transform_4, window_bounds = array<i64: 8, 256>}]} {
    %c0 = arith.constant 0 : index
    %c0_0 = arith.constant 0 : index
    %0 = vector.load %arg2[%c0, %c0_0] : memref<8x128xbf16, #tpu.memory_space<vmem>>, vector<8x128xbf16>
    %c0_1 = arith.constant 0 : index
    %c0_2 = arith.constant 0 : index
    %1 = vector.load %arg3[%c0_1, %c0_2] : memref<128x256xbf16, #tpu.memory_space<vmem>>, vector<128x256xbf16>
    %cst = arith.constant dense<0.000000e+00> : vector<8x256xf32>
    %2 = tpu.matmul %0, %1, %cst {dimension_numbers = #tpu.dot_dimension_numbers<[1], [0], [0], [1], [0, 0, 1, 1], [], []>} : vector<8x128xbf16>, vector<128x256xbf16>, vector<8x256xf32> -> vector<8x256xf32>
    %cst_3 = arith.constant -1.000000e+00 : f32
    %cst_4 = arith.constant 1.000000e+00 : f32
    %3 = vector.broadcast %cst_3 : f32 to vector<8x256xf32>
    %4 = arith.maximumf %3, %2 : vector<8x256xf32>
    %5 = vector.broadcast %cst_4 : f32 to vector<8x256xf32>
    %6 = arith.minimumf %5, %4 : vector<8x256xf32>
    %c0_5 = arith.constant 0 : index
    %c0_6 = arith.constant 0 : index
    %7 = vector.load %arg4[%c0_5, %c0_6] : memref<8x4xf32, #tpu.memory_space<vmem>>, vector<8x1xf32>
    %c0_7 = arith.constant 0 : index
    %c1 = arith.constant 1 : index
    %8 = vector.load %arg4[%c0_7, %c1] : memref<8x4xf32, #tpu.memory_space<vmem>>, vector<8x1xf32>
    %c0_8 = arith.constant 0 : index
    %c2 = arith.constant 2 : index
    %9 = vector.load %arg4[%c0_8, %c2] : memref<8x4xf32, #tpu.memory_space<vmem>>, vector<8x1xf32>
    %c0_9 = arith.constant 0 : index
    %c3 = arith.constant 3 : index
    %10 = vector.load %arg4[%c0_9, %c3] : memref<8x4xf32, #tpu.memory_space<vmem>>, vector<8x1xf32>
    %11 = arith.mulf %6, %6 : vector<8x256xf32>
    %cst_10 = arith.constant 1.000000e+00 : f32
    %12 = vector.broadcast %cst_10 : f32 to vector<8x256xf32>
    %13 = arith.subf %12, %11 : vector<8x256xf32>
    %cst_11 = arith.constant 0.000000e+00 : f32
    %14 = vector.broadcast %cst_11 : f32 to vector<8x256xf32>
    %15 = arith.maximumf %13, %14 : vector<8x256xf32>
    %16 = math.sqrt %15 : vector<8x256xf32>
    %17 = vector.broadcast %7 : vector<8x1xf32> to vector<8x256xf32>
    %18 = arith.mulf %6, %17 : vector<8x256xf32>
    %19 = vector.broadcast %8 : vector<8x1xf32> to vector<8x256xf32>
    %20 = arith.mulf %16, %19 : vector<8x256xf32>
    %21 = arith.subf %18, %20 : vector<8x256xf32>
    %22 = vector.broadcast %9 : vector<8x1xf32> to vector<8x256xf32>
    %23 = arith.cmpf ogt, %6, %22 : vector<8x256xf32>
    %24 = vector.broadcast %10 : vector<8x1xf32> to vector<8x256xf32>
    %25 = arith.subf %6, %24 : vector<8x256xf32>
    %26 = arith.select %23, %21, %25 : vector<8x256xi1>, vector<8x256xf32>
    %27 = tpu.iota {dimensions = array<i32: 1>} : vector<8x256xi32>
    %c256_i32 = arith.constant 256 : i32
    %28 = arith.muli %arg0, %c256_i32 : i32
    %29 = vector.broadcast %28 : i32 to vector<8x256xi32>
    %30 = arith.addi %27, %29 : vector<8x256xi32>
    %c0_12 = arith.constant 0 : index
    %c0_13 = arith.constant 0 : index
    %31 = vector.load %arg5[%c0_12, %c0_13] : memref<8x1xi32, #tpu.memory_space<vmem>>, vector<8x1xi32>
    %32 = vector.broadcast %31 : vector<8x1xi32> to vector<8x256xi32>
    %33 = arith.cmpi eq, %30, %32 : vector<8x256xi32>
    %34 = arith.select %33, %26, %6 : vector<8x256xi1>, vector<8x256xf32>
    %c0_14 = arith.constant 0 : index
    %c0_15 = arith.constant 0 : index
    %35 = vector.load %arg6[%c0_14, %c0_15] : memref<8x256xf32, #tpu.memory_space<vmem>>, vector<8x256xf32>
    tpu.vector_store %arg6[%c0_14, %c0_15], %34 {strides = array<i32>} : memref<8x256xf32, #tpu.memory_space<vmem>>, vector<8x256xf32>,
    return
  }
  func.func @transform_0(%arg0: i32, %arg1: i32) -> (i32, i32) {
    %c0_i32 = arith.constant 0 : i32
    %c0_i32_0 = arith.constant 0 : i32
    return %arg1, %c0_i32 : i32, i32
  }
  func.func @transform_1(%arg0: i32, %arg1: i32) -> (i32, i32) {
    %c0_i32 = arith.constant 0 : i32
    %c0_i32_0 = arith.constant 0 : i32
    return %c0_i32, %arg0 : i32, i32
  }
  func.func @transform_2(%arg0: i32, %arg1: i32) -> (i32, i32) {
    %c0_i32 = arith.constant 0 : i32
    %c0_i32_0 = arith.constant 0 : i32
    return %arg1, %c0_i32 : i32, i32
  }
  func.func @transform_3(%arg0: i32, %arg1: i32) -> (i32, i32) {
    %c0_i32 = arith.constant 0 : i32
    %c0_i32_0 = arith.constant 0 : i32
    return %arg1, %c0_i32 : i32, i32
  }
  func.func @transform_4(%arg0: i32, %arg1: i32) -> (i32, i32) {
    %c0_i32 = arith.constant 0 : i32
    return %arg1, %arg0 : i32, i32
  }
}

</mosaic_0001>

<llo_original>
// kernel: tpu_custom_call.1
$region0: #{tpu_custom_call.1}
  #allocation0 [shape = 'u32[]', space=smem, size = 0x4, offset = 0x4, fixed_abs, tag = 'smem constant byte address 0x4 - core index']
  #allocation1 [shape = 'u32[144,128]{1,0:T(1,128)}', space=vmem, size = 0x12000, scoped, tag = 'internal scratch']
  %s0 = inlined_call_operand.vmem [shape: bf16[8,128], index: 0, kind: input, shape index: {}]
  %s1 = inlined_call_operand.hbm [shape: bf16[128,512], index: 1, kind: input, shape index: {}]
  %s2 = inlined_call_operand.vmem [shape: f32[8,4], index: 2, kind: input, shape index: {}]
  %s3 = inlined_call_operand.vmem [shape: s32[8,1], index: 3, kind: input, shape index: {}]
  %s4 = inlined_call_operand.hbm [shape: f32[8,512], index: 4, kind: output, shape index: {}]
  %s5 = sld [smem:[#allocation0]]
  $region53: #{tpu_custom_call.1} parent=0
    _
  %s7 = ssub.s32 1, %s5
  %s8 = scalar_select 0, %s7, %s5
  $region1: #{tpu_custom_call.1} parent=0
    #allocation2 [shape = 'u8[131072]{0}', space=vmem, size = 0x20000, scoped, tag = 'input window, operand 1']
    #allocation3 [shape = 's32[2]{0}', space=sflag, size = 0x8, scoped, tag = 'scoped memory for tpu_custom_call.1']
    #allocation4 [shape = 's32[2]{0}', space=sflag, size = 0x8, scoped, tag = 'scoped memory for tpu_custom_call.1']
    #allocation5 [shape = 'u8[16384]{0}', space=vmem, size = 0x4000, scoped, tag = 'output window, operand 0']
    %9 = vsyncpa [#allocation3], 0
    %s10 = scalar_lea.sflag [#allocation3], 1
    %11 = vsyncpa %s10, 0
    %12 = vsyncpa [#allocation4], 0
    %s13 = scalar_lea.sflag [#allocation4], 1
    %14 = vsyncpa %s13, 0
    loop: start=0, step=1, limit=4
    $region2: #{tpu_custom_call.1} parent=1 // loop_pre_header
      _
    $region3: #{tpu_custom_call.1} parent=1 // loop_header
      %s16 = sphi 0, %s20
      %p17 = scmp.ge.s32.totalorder %s16, 4
      %s23 = sphi 0, %s35
      %s24 = sphi 0, %s31
      %s25 = sphi 0, %s23
      %s26 = sphi 0, %s24
      %s27 = sphi 0, %s25
      %s28 = sphi 0, %s26
      %s38 = sphi 0, %s40
      %s41 = sphi 0, %s38
      %s42 = sphi 0, %s41
      %s58 = sphi 0, %s42
      %s64 = sphi 0, %s66
      %s67 = sphi 0, %s64
      %s68 = sphi 0, %s67
      %s84 = sphi 0, %s68
      %s90 = sphi 0, %s92
      %s93 = sphi 0, %s90
      %s94 = sphi 0, %s93
      %s110 = sphi 0, %s94
      %s116 = sphi 0, %s118
      %s119 = sphi 0, %s116
      %s120 = sphi 0, %s119
      %s136 = sphi 0, %s120
      %s144 = sphi 0, %s146
      %s147 = sphi 0, %s144
      %s148 = sphi 0, %s147
      %s164 = sphi 0, %s148
    $region4: #{tpu_custom_call.1} parent=1 // loop_header_branch
      %19 = sbr.rel (%p17) target = $region8
    $region5: #{tpu_custom_call.1} parent=1 // loop_body
      %s21 = ssub.s32 %s16, 1
      %s22 = ssub.s32 %s16, 2
      %s29 = sadd.s32 1, %s24
      %p30 = scmp.ge.s32.totalorder %s29, 1
      %s31 = scalar_select %p30, 0, %s29
      %s32 = sadd.s32 1, %s23
      %s33 = scalar_select %p30, %s32, %s23
      %p34 = scmp.ge.s32.totalorder %s33, 2
      %s35 = scalar_select %p34, 0, %s33
      %s36 = ssub.s32 %s24, %s31
      %p37 = scmp.eq.s32.totalorder %s36, 0
      %s39 = sadd.s32 %s38, 1
      %s40 = scalar_select %p37, %s38, %s39
      %p43 = pneg %p37
      %p44 = scmp.eq.s32.totalorder %s16, 1
      %p45 = por %p43, %p44
      %p46 = scmp.ne.s32.totalorder %s38, %s41
      %p47 = scmp.eq.s32.totalorder %s16, 0
      %p48 = por %p46, %p47
      %p49 = scmp.ne.s32.totalorder %s38, %s41
      %p50 = scmp.eq.s32.totalorder %s21, 1
      %p51 = por %p49, %p50
      %p52 = scmp.ne.s32.totalorder %s41, %s42
      %p53 = scmp.eq.s32.totalorder %s21, 0
      %p54 = por %p52, %p53
      %p55 = scmp.ne.s32.totalorder %s41, %s42
      %p56 = scmp.eq.s32.totalorder %s22, 1
      %p57 = por %p55, %p56
      %p59 = scmp.ne.s32.totalorder %s42, %s58
      %p60 = scmp.eq.s32.totalorder %s22, 0
      %p61 = por %p59, %p60
      %s62 = ssub.s32 %s23, %s35
      %p63 = scmp.eq.s32.totalorder %s62, 0
      %s65 = sadd.s32 %s64, 1
      %s66 = scalar_select %p63, %s64, %s65
      %p69 = pneg %p63
      %p70 = scmp.eq.s32.totalorder %s16, 1
      %p71 = por %p69, %p70
      %p72 = scmp.ne.s32.totalorder %s64, %s67
      %p73 = scmp.eq.s32.totalorder %s16, 0
      %p74 = por %p72, %p73
      %p75 = scmp.ne.s32.totalorder %s64, %s67
      %p76 = scmp.eq.s32.totalorder %s21, 1
      %p77 = por %p75, %p76
      %p78 = scmp.ne.s32.totalorder %s67, %s68
      %p79 = scmp.eq.s32.totalorder %s21, 0
      %p80 = por %p78, %p79
      %p81 = scmp.ne.s32.totalorder %s67, %s68
      %p82 = scmp.eq.s32.totalorder %s22, 1
      %p83 = por %p81, %p82
      %p85 = scmp.ne.s32.totalorder %s68, %s84
      %p86 = scmp.eq.s32.totalorder %s22, 0
      %p87 = por %p85, %p86
      %s88 = ssub.s32 %s24, %s31
      %p89 = scmp.eq.s32.totalorder %s88, 0
      %s91 = sadd.s32 %s90, 1
      %s92 = scalar_select %p89, %s90, %s91
      %p95 = pneg %p89
      %p96 = scmp.eq.s32.totalorder %s16, 1
      %p97 = por %p95, %p96
      %p98 = scmp.ne.s32.totalorder %s90, %s93
      %p99 = scmp.eq.s32.totalorder %s16, 0
      %p100 = por %p98, %p99
      %p101 = scmp.ne.s32.totalorder %s90, %s93
      %p102 = scmp.eq.s32.totalorder %s21, 1
      %p103 = por %p101, %p102
      %p104 = scmp.ne.s32.totalorder %s93, %s94
      %p105 = scmp.eq.s32.totalorder %s21, 0
      %p106 = por %p104, %p105
      %p107 = scmp.ne.s32.totalorder %s93, %s94
      %p108 = scmp.eq.s32.totalorder %s22, 1
      %p109 = por %p107, %p108
      %p111 = scmp.ne.s32.totalorder %s94, %s110
      %p112 = scmp.eq.s32.totalorder %s22, 0
      %p113 = por %p111, %p112
      %s114 = ssub.s32 %s24, %s31
      %p115 = scmp.eq.s32.totalorder %s114, 0
      %s117 = sadd.s32 %s116, 1
      %s118 = scalar_select %p115, %s116, %s117
      %p121 = pneg %p115
      %p122 = scmp.eq.s32.totalorder %s16, 1
      %p123 = por %p121, %p122
      %p124 = scmp.ne.s32.totalorder %s116, %s119
      %p125 = scmp.eq.s32.totalorder %s16, 0
      %p126 = por %p124, %p125
      %p127 = scmp.ne.s32.totalorder %s116, %s119
      %p128 = scmp.eq.s32.totalorder %s21, 1
      %p129 = por %p127, %p128
      %p130 = scmp.ne.s32.totalorder %s119, %s120
      %p131 = scmp.eq.s32.totalorder %s21, 0
      %p132 = por %p130, %p131
      %p133 = scmp.ne.s32.totalorder %s119, %s120
      %p134 = scmp.eq.s32.totalorder %s22, 1
      %p135 = por %p133, %p134
      %p137 = scmp.ne.s32.totalorder %s120, %s136
      %p138 = scmp.eq.s32.totalorder %s22, 0
      %p139 = por %p137, %p138
      %s140 = ssub.s32 %s24, %s31
      %s141 = ssub.s32 %s23, %s35
      %s142 = sor.u32 %s140, %s141
      %p143 = scmp.eq.s32.totalorder %s142, 0
      %s145 = sadd.s32 %s144, 1
      %s146 = scalar_select %p143, %s144, %s145
      %p149 = pneg %p143
      %p150 = scmp.eq.s32.totalorder %s16, 1
      %p151 = por %p149, %p150
      %p152 = scmp.ne.s32.totalorder %s144, %s147
      %p153 = scmp.eq.s32.totalorder %s16, 0
      %p154 = por %p152, %p153
      %p155 = scmp.ne.s32.totalorder %s144, %s147
      %p156 = scmp.eq.s32.totalorder %s21, 1
      %p157 = por %p155, %p156
      %p158 = scmp.ne.s32.totalorder %s147, %s148
      %p159 = scmp.eq.s32.totalorder %s21, 0
      %p160 = por %p158, %p159
      %p161 = scmp.ne.s32.totalorder %s147, %s148
      %p162 = scmp.eq.s32.totalorder %s22, 1
      %p163 = por %p161, %p162
      %p165 = scmp.ne.s32.totalorder %s148, %s164
      %p166 = scmp.eq.s32.totalorder %s22, 0
      %p167 = por %p165, %p166
      %p168 = scmp.le.s32.totalorder 1, %s16
      %p169 = scmp.lt.s32.totalorder %s16, 3
      %p170 = pnand %p168, %p169
      %p171 = pneg %p170
      // Predicated region
      $region9: #{tpu_custom_call.1} parent=5 // pred_check
        _
      $region10: #{tpu_custom_call.1} parent=5 // pred_check_branch
        %173 = sbr.rel (%p170) target = $region12
      $region11: #{tpu_custom_call.1} parent=5 // pred_region
        %s174 = ssub.s32 %s16, 1
        // Predicated region
        $region13: #{tpu_custom_call.1} parent=11 // pred_check
          %p175 = pneg %p54
        $region14: #{tpu_custom_call.1} parent=11 // pred_check_branch
          %177 = sbr.rel (%p175) target = $region16
        $region15: #{tpu_custom_call.1} parent=11 // pred_region
          %p178 = scmp.lt.s32.totalorder %s26, 0
          %s179 = scalar_select %p178, %s26, 0
          %s180 = smul.addr %s179, 4
          %s181 = scalar_lea.vmem %s0, %s180
        $region16: #{tpu_custom_call.1} parent=11 // pred_fallthru
          _
        // Predicated region
        $region17: #{tpu_custom_call.1} parent=11 // pred_check
          %p182 = pneg %p106
        $region18: #{tpu_custom_call.1} parent=11 // pred_check_branch
          %184 = sbr.rel (%p182) target = $region20
        $region19: #{tpu_custom_call.1} parent=11 // pred_region
          %p185 = scmp.lt.s32.totalorder %s26, 0
          %s186 = scalar_select %p185, %s26, 0
          %s187 = smul.addr %s186, 8
          %s188 = scalar_lea.vmem %s2, %s187
        $region20: #{tpu_custom_call.1} parent=11 // pred_fallthru
          _
        // Predicated region
        $region21: #{tpu_custom_call.1} parent=11 // pred_check
          %p189 = pneg %p132
        $region22: #{tpu_custom_call.1} parent=11 // pred_check_branch
          %191 = sbr.rel (%p189) target = $region24
        $region23: #{tpu_custom_call.1} parent=11 // pred_region
          %p192 = scmp.lt.s32.totalorder %s26, 0
          %s193 = scalar_select %p192, %s26, 0
          %s194 = smul.addr %s193, 8
          %s195 = scalar_lea.vmem %s3, %s194
        $region24: #{tpu_custom_call.1} parent=11 // pred_fallthru
          _
      $region12: #{tpu_custom_call.1} parent=5 // pred_fallthru
        _
      %p196 = scmp.lt.s32.totalorder %s16, 2
      // Predicated region
      $region25: #{tpu_custom_call.1} parent=5 // pred_check
        %p197 = pneg %p196
      $region26: #{tpu_custom_call.1} parent=5 // pred_check_branch
        %199 = sbr.rel (%p197) target = $region28
      $region27: #{tpu_custom_call.1} parent=5 // pred_region
        // Predicated region
        $region29: #{tpu_custom_call.1} parent=27 // pred_check
          %p200 = pneg %p74
        $region30: #{tpu_custom_call.1} parent=27 // pred_check_branch
          %202 = sbr.rel (%p200) target = $region32
        $region31: #{tpu_custom_call.1} parent=27 // pred_region
          %s203 = sand.u32 %s64, 1
          %s204 = scalar_lea.sflag [#allocation3], %s203
          %s205 = sand.u32 %s64, 1
          %s206 = smul.addr %s205, 128
          %s207 = scalar_lea.vmem [#allocation2], %s206
          %s208 = smul.u32 2, %s23
          %s210 = ssub.s32 2048, 2048
          %211 = vsyncadd %s204, %s210
          %s212 = smul.addr %s208, 64
          %s213 = scalar_lea.hbm %s1, %s212
          %s214 = sshll.u32 %s207, 4
          %s215 = int_to_ptr.vmem [resolvable:$true] %s214
          %220 = dma.hbm_to_vmem [thread:$0]  %s213, 2048, %s215, %s204, 256, 128, 8
        $region32: #{tpu_custom_call.1} parent=27 // pred_fallthru
          _
      $region28: #{tpu_custom_call.1} parent=5 // pred_fallthru
        _
      %p221 = scmp.le.s32.totalorder 1, %s16
      %p222 = scmp.lt.s32.totalorder %s16, 3
      %p223 = pnand %p221, %p222
      %p224 = pneg %p223
      // Predicated region
      $region33: #{tpu_custom_call.1} parent=5 // pred_check
        _
      $region34: #{tpu_custom_call.1} parent=5 // pred_check_branch
        %226 = sbr.rel (%p223) target = $region36
      $region35: #{tpu_custom_call.1} parent=5 // pred_region
        %s227 = ssub.s32 %s16, 1
        %s228 = sand.u32 %s67, 1
        %s229 = scalar_lea.sflag [#allocation3], %s228
        %s230 = sand.u32 %s67, 1
        %s231 = smul.addr %s230, 128
        %s232 = scalar_lea.vmem [#allocation2], %s231
        // Predicated region
        $region37: #{tpu_custom_call.1} parent=35 // pred_check
          %p233 = pneg %p80
        $region38: #{tpu_custom_call.1} parent=35 // pred_check_branch
          %235 = sbr.rel (%p233) target = $region40
        $region39: #{tpu_custom_call.1} parent=35 // pred_region
          %236 = dma.done %s229, 2048
        $region40: #{tpu_custom_call.1} parent=35 // pred_fallthru
          _
        %p237 = scmp.lt.s32.totalorder %s26, 0
        %s238 = scalar_select %p237, %s26, 0
        %s239 = smul.addr %s238, 4
        %s240 = scalar_lea.vmem %s0, %s239
        %p241 = pneg %p54
        %p242 = pneg %p51
        %s243 = sand.u32 %s67, 1
        %s244 = scalar_lea.sflag [#allocation3], %s243
        %s245 = sand.u32 %s67, 1
        %s246 = smul.addr %s245, 128
        %s247 = scalar_lea.vmem [#allocation2], %s246
        %p248 = pneg %p80
        %p249 = pneg %p77
        %p250 = scmp.lt.s32.totalorder %s26, 0
        %s251 = scalar_select %p250, %s26, 0
        %s252 = smul.addr %s251, 8
        %s253 = scalar_lea.vmem %s2, %s252
        %p254 = pneg %p106
        %p255 = pneg %p103
        %p256 = scmp.lt.s32.totalorder %s26, 0
        %s257 = scalar_select %p256, %s26, 0
        %s258 = smul.addr %s257, 8
        %s259 = scalar_lea.vmem %s3, %s258
        %p260 = pneg %p132
        %p261 = pneg %p129
        %p262 = pneg %p160
        %p263 = pneg %p157
        %s264 = sand.u32 %s147, 1
        %s265 = scalar_lea.sflag [#allocation4], %s264
        %s266 = sand.u32 %s147, 1
        %s267 = smul.addr %s266, 16
        %s268 = scalar_lea.vmem [#allocation5], %s267
        %p269 = scmp.lt.s32.totalorder %s26, 0
        %s270 = scalar_select %p269, %s26, 0
        %s271 = smul.addr %s270, 4
        %s272 = scalar_lea.vmem %s0, %s271
        %s273 = smul.u32 2, %s25
        %p274 = scmp.lt.s32.totalorder %s26, 0
        %s275 = scalar_select %p274, %s26, 0
        %s276 = smul.addr %s275, 8
        %s277 = scalar_lea.vmem %s2, %s276
        %p278 = scmp.lt.s32.totalorder %s26, 0
        %s279 = scalar_select %p278, %s26, 0
        %s280 = smul.addr %s279, 8
        %s281 = scalar_lea.vmem %s3, %s280
        %s282 = smul.u32 2, %s25
        %v284 = vld [vmem:[%s272] sm:$0xf]
        %v285 = vld [vmem:[%s232] sm:$0xff]
        %v286 = vld [vmem:[%s232 + $0x8] sm:$0xff]
        %v287 = vld [vmem:[%s232 + $0x10] sm:$0xff]
        %v288 = vld [vmem:[%s232 + $0x18] sm:$0xff]
        %v289 = vld [vmem:[%s232 + $0x20] sm:$0xff]
        %v290 = vld [vmem:[%s232 + $0x28] sm:$0xff]
        %v291 = vld [vmem:[%s232 + $0x30] sm:$0xff]
        %v292 = vld [vmem:[%s232 + $0x38] sm:$0xff]
        %v293 = vld [vmem:[%s232 + $0x40] sm:$0xff]
        %v294 = vld [vmem:[%s232 + $0x48] sm:$0xff]
        %v295 = vld [vmem:[%s232 + $0x50] sm:$0xff]
        %v296 = vld [vmem:[%s232 + $0x58] sm:$0xff]
        %v297 = vld [vmem:[%s232 + $0x60] sm:$0xff]
        %v298 = vld [vmem:[%s232 + $0x68] sm:$0xff]
        %v299 = vld [vmem:[%s232 + $0x70] sm:$0xff]
        %v300 = vld [vmem:[%s232 + $0x78] sm:$0xff]
        %v317 = vunpack.c.l.b16 %v285
        %v318 = vunpack.c.h.b16 %v285
        %v319 = vunpack.c.l.b16 %v286
        %v320 = vunpack.c.h.b16 %v286
        %v321 = vunpack.c.l.b16 %v287
        %v322 = vunpack.c.h.b16 %v287
        %v323 = vunpack.c.l.b16 %v288
        %v324 = vunpack.c.h.b16 %v288
        %v325 = vunpack.c.l.b16 %v289
        %v326 = vunpack.c.h.b16 %v289
        %v327 = vunpack.c.l.b16 %v290
        %v328 = vunpack.c.h.b16 %v290
        %v329 = vunpack.c.l.b16 %v291
        %v330 = vunpack.c.h.b16 %v291
        %v331 = vunpack.c.l.b16 %v292
        %v332 = vunpack.c.h.b16 %v292
        %v333 = vunpack.c.l.b16 %v293
        %v334 = vunpack.c.h.b16 %v293
        %v335 = vunpack.c.l.b16 %v294
        %v336 = vunpack.c.h.b16 %v294
        %v337 = vunpack.c.l.b16 %v295
        %v338 = vunpack.c.h.b16 %v295
        %v339 = vunpack.c.l.b16 %v296
        %v340 = vunpack.c.h.b16 %v296
        %v341 = vunpack.c.l.b16 %v297
        %v342 = vunpack.c.h.b16 %v297
        %v343 = vunpack.c.l.b16 %v298
        %v344 = vunpack.c.h.b16 %v298
        %v345 = vunpack.c.l.b16 %v299
        %v346 = vunpack.c.h.b16 %v299
        %v347 = vunpack.c.l.b16 %v300
        %v348 = vunpack.c.h.b16 %v300
        %v349 = vpack.c.b16 %v319, %v317
        %v350 = vpack.c.b16 %v320, %v318
        %v351 = vpack.c.b16 %v323, %v321
        %v352 = vpack.c.b16 %v324, %v322
        %v353 = vpack.c.b16 %v327, %v325
        %v354 = vpack.c.b16 %v328, %v326
        %v355 = vpack.c.b16 %v331, %v329
        %v356 = vpack.c.b16 %v332, %v330
        %v357 = vpack.c.b16 %v335, %v333
        %v358 = vpack.c.b16 %v336, %v334
        %v359 = vpack.c.b16 %v339, %v337
        %v360 = vpack.c.b16 %v340, %v338
        %v361 = vpack.c.b16 %v343, %v341
        %v362 = vpack.c.b16 %v344, %v342
        %v363 = vpack.c.b16 %v347, %v345
        %v364 = vpack.c.b16 %v348, %v346
        %381 = vmatprep.subr.bf16.mxu0 %v364
        %382 = vmatpush1.bf16.msra.mxu0 %v363
        %383 = vmatprep.subr.bf16.mxu0 %v362
        %384 = vmatpush1.bf16.msra.mxu0 %v361
        %385 = vmatprep.subr.bf16.mxu0 %v360
        %386 = vmatpush1.bf16.msra.mxu0 %v359
        %387 = vmatprep.subr.bf16.mxu0 %v358
        %388 = vmatpush1.bf16.msra.mxu0 %v357
        %389 = vmatprep.subr.bf16.mxu0 %v356
        %390 = vmatpush1.bf16.msra.mxu0 %v355
        %391 = vmatprep.subr.bf16.mxu0 %v354
        %392 = vmatpush1.bf16.msra.mxu0 %v353
        %393 = vmatprep.subr.bf16.mxu0 %v352
        %394 = vmatpush1.bf16.msra.mxu0 %v351
        %395 = vmatprep.subr.bf16.mxu0 %v350
        %396 = vmatpush1.bf16.msra.mxu0 %v349
        %397 = vmatprep.subr.bf16.mxu0 0
        %398 = vmatpush2.bf16.msra.mxu0 0
        %399 = vmatprep.subr.bf16.mxu0 0
        %400 = vmatpush2.bf16.msra.mxu0 0
        %401 = vmatprep.subr.bf16.mxu0 0
        %402 = vmatpush2.bf16.msra.mxu0 0
        %403 = vmatprep.subr.bf16.mxu0 0
        %404 = vmatpush2.bf16.msra.mxu0 0
        %405 = vmatprep.subr.bf16.mxu0 0
        %406 = vmatpush2.bf16.msra.mxu0 0
        %407 = vmatprep.subr.bf16.mxu0 0
        %408 = vmatpush2.bf16.msra.mxu0 0
        %409 = vmatprep.subr.bf16.mxu0 0
        %410 = vmatpush2.bf16.msra.mxu0 0
        %411 = vmatprep.subr.bf16.mxu0 0
        %412 = vmatpush2.bf16.msra.mxu0 0
        %413 = vmatprep.mubr.bf16.mxu0 0
        %414 = vmatmul.mubr.bf16.gmra.mxu0 %v284
        %v415 = vpop.f32.mrf.mxu0
        %v416 = vadd.f32 0.0, %v415
        %v417 = vpop.f32.mrf.mxu0
        %v418 = vadd.f32 0.0, %v417
        %v419 = vpop.f32.mrf.mxu0
        %v420 = vpop.f32.mrf.mxu0
        %421 = vdwg.mxu0
        %v422 = vmax.f32 %v416, -1.0
        %v423 = vmax.f32 %v418, -1.0
        %v424 = vmin.f32 %v422, 1.0
        %v425 = vmin.f32 %v423, 1.0
        %v426 = vld [vmem:[%s277] sm:$0xff]
        %v427 = vmul.f32 %v424, %v424
        %v428 = vmul.f32 %v425, %v425
        %v429 = vsub.f32 1.0, %v427
        %v430 = vsub.f32 1.0, %v428
        %v431 = vmax.f32 %v429, 0.0
        %v432 = vmax.f32 %v430, 0.0
        %v433 = vrsqrt.pop %v431
        %v434 = vmul.f32 %v431, %v433
        %vm435 = vcmp.eq.f32.partialorder %v431, inf
        %v436 = vsel %vm435, %v431, %v434
        %vm437 = vcmp.eq.f32.partialorder %v431, 0.0
        %v438 = vand.u32 %v431, 2147483648
        %v439 = vsel %vm437, %v438, %v436
        %v440 = vrsqrt.pop %v432
        %v441 = vmul.f32 %v432, %v440
        %vm442 = vcmp.eq.f32.partialorder %v432, inf
        %v443 = vsel %vm442, %v432, %v441
        %vm444 = vcmp.eq.f32.partialorder %v432, 0.0
        %v445 = vand.u32 %v432, 2147483648
        %v446 = vsel %vm444, %v445, %v443
        %448 = vset.pattern.permute.xlu0 0
        %449 = vperm.xlu0 %448, %v426
        %v450 = vpop.permute.xlu0 %449
        %v452 = vmul.f32 %v424, %v450
        %v453 = vmul.f32 %v425, %v450
        %454 = vset.pattern.permute.xlu0 1
        %455 = vperm.xlu0 %454, %v426
        %v456 = vpop.permute.xlu0 %455
        %v458 = vmul.f32 %v439, %v456
        %v459 = vmul.f32 %v446, %v456
        %v460 = vsub.f32 %v452, %v458
        %v461 = vsub.f32 %v453, %v459
        %462 = vset.pattern.permute.xlu0 2
        %463 = vperm.xlu0 %462, %v426
        %v464 = vpop.permute.xlu0 %463
        %vm466 = vcmp.gt.f32.partialorder %v424, %v464
        %vm467 = vcmp.gt.f32.partialorder %v425, %v464
        %468 = vset.pattern.permute.xlu0 3
        %469 = vperm.xlu0 %468, %v426
        %v470 = vpop.permute.xlu0 %469
        %v472 = vsub.f32 %v424, %v470
        %v473 = vsub.f32 %v425, %v470
        %v474 = vsel %vm466, %v460, %v472
        %v475 = vsel %vm467, %v461, %v473
        %v476 = vlaneseq
        %v477 = vand.u32 %v476, 127
        %v478 = vadd.s32 %v477, 128
        %s479 = smul.u32 %s25, 256
        %v480 = vstv %s479
        %v481 = vadd.s32 %v477, %v480
        %v482 = vadd.s32 %v478, %v480
        %v483 = vld [vmem:[%s281] sm:$0xff]
        %484 = vset.pattern.permute.xlu0 0
        %485 = vperm.xlu0 %484, %v483
        %v486 = vpop.permute.xlu0 %485
        %vm487 = vcmp.eq.s32.totalorder %v481, %v486
        %vm488 = vcmp.eq.s32.totalorder %v482, %v486
        %v489 = vsel %vm487, %v474, %v424
        %v490 = vsel %vm488, %v475, %v425
        %491 = vst [vmem:[%s268] sm:$0xff] %v489
        %492 = vst [vmem:[%s268 + $0x8] sm:$0xff] %v490
        %s493 = sand.u32 %s147, 1
        %s494 = scalar_lea.sflag [#allocation4], %s493
        %s495 = sand.u32 %s147, 1
        %s496 = smul.addr %s495, 16
        %s497 = scalar_lea.vmem [#allocation5], %s496
        // Predicated region
        $region41: #{tpu_custom_call.1} parent=35 // pred_check
          %p498 = pneg %p157
        $region42: #{tpu_custom_call.1} parent=35 // pred_check_branch
          %500 = sbr.rel (%p498) target = $region44
        $region43: #{tpu_custom_call.1} parent=35 // pred_region
          %s501 = smul.u32 2, %s25
          %s503 = ssub.s32 256, 256
          %504 = vsyncadd %s494, %s503
          %s505 = smul.addr %s26, 4
          %s506 = sadd.s32 %s501, %s505
          %s507 = smul.addr %s506, 128
          %s508 = scalar_lea.hbm %s4, %s507
          %s510 = sshll.u32 %s497, 4
          %s511 = int_to_ptr.vmem [resolvable:$true] %s510
          %513 = dma.vmem_to_hbm [thread:$0]  %s511, 256, %s508, %s494
        $region44: #{tpu_custom_call.1} parent=35 // pred_fallthru
          _
      $region36: #{tpu_custom_call.1} parent=5 // pred_fallthru
        _
      %p514 = scmp.le.s32.totalorder 2, %s16
      // Predicated region
      $region45: #{tpu_custom_call.1} parent=5 // pred_check
        %p515 = pneg %p514
      $region46: #{tpu_custom_call.1} parent=5 // pred_check_branch
        %517 = sbr.rel (%p515) target = $region48
      $region47: #{tpu_custom_call.1} parent=5 // pred_region
        %s518 = ssub.s32 %s16, 2
        // Predicated region
        $region49: #{tpu_custom_call.1} parent=47 // pred_check
          %p519 = pneg %p163
        $region50: #{tpu_custom_call.1} parent=47 // pred_check_branch
          %521 = sbr.rel (%p519) target = $region52
        $region51: #{tpu_custom_call.1} parent=47 // pred_region
          %s522 = sand.u32 %s148, 1
          %s523 = scalar_lea.sflag [#allocation4], %s522
          %s524 = sand.u32 %s148, 1
          %s525 = smul.addr %s524, 16
          %s526 = scalar_lea.vmem [#allocation5], %s525
          %527 = dma.done %s523, 256
        $region52: #{tpu_custom_call.1} parent=47 // pred_fallthru
          _
      $region48: #{tpu_custom_call.1} parent=5 // pred_fallthru
        _
    $region6: #{tpu_custom_call.1} parent=1 // loop_footer
      %s20 = sadd.s32 1, %s16
    $region7: #{tpu_custom_call.1} parent=1 // loop_footer_branch
      %15 = sbr.rel target = $region3
    $region8: #{tpu_custom_call.1} parent=1 // loop_exit
      _
    %528 = vsyncpa [#allocation3], 1
    %s529 = scalar_lea.sflag [#allocation3], 1
    %530 = vsyncpa %s529, 1
    %531 = vsyncpa [#allocation4], 1
    %s532 = scalar_lea.sflag [#allocation4], 1
    %533 = vsyncpa %s532, 1

</llo_original>
